<compile_context>
chip_gen: v5e
topology: v5e:2x2
jax: 0.10.0
libtpu: 0.0.40
codegen_flags: <defaults>
</compile_context>

<pallas_src>
import numpy as np

import jax
import jax.numpy as jnp
from jax.experimental import pallas as pl
from jax.experimental.pallas import tpu as pltpu

_LANE = 128
_SUBLANE = 8


def _round_up(x, m):
    return (x + m - 1) // m * m


def _mof_encoder_kernel(idx_ref, ew1_ref, b1_ref, w2_ref, b2_ref, w3_ref,
                        b3_ref, out_ref):
    # ---- embedding lookup + feature-sum + layer 1, fused ----
    # multihot[b, v] = 1 iff some feature's flat index equals vocab lane v.
    # Features own disjoint vocab segments, so summing 0/1 one-hots is exact.
    # Padded rows carry -1 and never match any lane.
    idx = idx_ref[...]                                       # [Bt, F] int32
    bt, vp = idx.shape[0], ew1_ref.shape[0]
    col = jax.lax.broadcasted_iota(jnp.int32, (bt, vp), 1)   # lane index
    multihot = (idx[:, 0:1] == col).astype(jnp.float32)
    for f in range(1, idx.shape[1]):                         # F: Python const
        multihot = multihot + (idx[:, f:f + 1] == col).astype(jnp.float32)

    # h1 = ReLU(sum_f E[idx_f] @ W1 + b1) == ReLU(multihot @ (E @ W1) + b1)
    h = jnp.dot(multihot, ew1_ref[...],
                preferred_element_type=jnp.float32)          # [Bt, Lp] f32
    h = jnp.maximum(h + b1_ref[...], 0.0)

    # ---- remaining MLP layers: L -> L -> 2L, ReLU after each ----
    # bf16 weights on the MXU, f32 accumulation, f32 elementwise math.
    wdt = w2_ref.dtype
    h = jnp.maximum(
        jnp.dot(h.astype(wdt), w2_ref[...],
                preferred_element_type=jnp.float32) + b2_ref[...], 0.0)
    h = jnp.maximum(
        jnp.dot(h.astype(wdt), w3_ref[...],
                preferred_element_type=jnp.float32) + b3_ref[...], 0.0)
    out_ref[...] = h.astype(out_ref.dtype)


def prepare_mof_encoder_params(emb_table, params, mof_dims):
    """One-time parameter prep: pad to lane-dense shapes and pre-multiply
    the concatenated embedding table by W1.  Cache the returned pytree;
    the per-call forward never touches O(weights) data on the host path."""
    w1, b1, w2, b2, w3, b3 = params
    V, L = emb_table.shape
    OUT = w3.shape[1]
    Vp, Lp, OUTp = _round_up(V, _LANE), _round_up(L, _LANE), _round_up(OUT, _LANE)

    # EW1 = E @ W1 in f32 (exact products of the stored bf16 values).
    ew1 = jnp.dot(emb_table.astype(jnp.float32), w1.astype(jnp.float32))
    ew1p = jnp.zeros((Vp, Lp), jnp.float32).at[:V, :L].set(ew1)

    def pad_w(w, rows, cols, r, c):
        return jnp.zeros((rows, cols), w.dtype).at[:r, :c].set(w)

    def pad_b(b, cols, c):
        return (jnp.zeros((1, cols), jnp.float32)
                .at[:, :c].set(b.reshape(1, -1).astype(jnp.float32)))

    prepared = {
        "ew1": ew1p,
        "b1": pad_b(b1, Lp, L),
        "w2": pad_w(w2, Lp, Lp, L, L),
        "b2": pad_b(b2, Lp, L),
        "w3": pad_w(w3, Lp, OUTp, L, OUT),
        "b3": pad_b(b3, OUTp, OUT),
        "offsets": jnp.asarray(
            np.concatenate([[0], np.cumsum(mof_dims)[:-1]]).astype(np.int32)),
        "out_dim": OUT,
    }
    return prepared


def mof_encoder_forward(mof, prepared, *, batch_tile=1024,
                        out_dtype=jnp.bfloat16):
    """mof: [B, n_features] int32.  Returns [B, 2*latent_dim] in `out_dtype`.

    batch_tile default 1024 targets the v5e/v6e HBM-roofline knee; on v7x a
    larger value (>=2048) further amortizes the per-step cost."""
    B, F = mof.shape
    ew1, b1 = prepared["ew1"], prepared["b1"]
    w2, b2, w3, b3 = prepared["w2"], prepared["b2"], prepared["w3"], prepared["b3"]
    OUT = prepared["out_dim"]
    Vp, Lp = ew1.shape
    OUTp = w3.shape[1]

    # Batch tile: big enough to amortize per-step overhead, but capped so the
    # grid has >= 2 steps for medium/large batches (v7x megacore split).
    Bt = min(batch_tile, max(_SUBLANE, _round_up((B + 1) // 2, _SUBLANE)))
    Bp = _round_up(B, Bt)

    # Per-call index prep is O(B*F): fold per-feature offsets into flat
    # indices; pad rows with -1 (matches no vocab lane -> zero multihot row).
    flat_idx = mof.astype(jnp.int32) + prepared["offsets"][None, :]   # [B, F]
    flat_idx = jnp.pad(flat_idx, ((0, Bp - B), (0, 0)), constant_values=-1)

    grid = (Bp // Bt,)
    batch_spec = lambda shape: pl.BlockSpec(shape, lambda i: (i, 0))
    const_spec = lambda shape: pl.BlockSpec(shape, lambda i: (0, 0))

    out = pl.pallas_call(
        _mof_encoder_kernel,
        out_shape=jax.ShapeDtypeStruct((Bp, OUTp), out_dtype),
        grid=grid,
        in_specs=[
            batch_spec((Bt, F)),            # raw flat indices (F == full dim)
            const_spec((Vp, Lp)),           # EW1 = E @ W1, f32
            const_spec((1, Lp)),            # b1
            const_spec((Lp, Lp)),           # W2
            const_spec((1, Lp)),            # b2
            const_spec((Lp, OUTp)),         # W3
            const_spec((1, OUTp)),          # b3
        ],
        out_specs=batch_spec((Bt, OUTp)),
        compiler_params=pltpu.CompilerParams(
            dimension_semantics=("parallel",)),
    )(flat_idx, ew1, b1, w2, b2, w3, b3)

    return out[:B, :OUT]


def _reference(mof, emb_table, params, *, mof_dims):
    """Pure-JAX reference matching the PyTorch forward semantics."""
    w1, b1, w2, b2, w3, b3 = params
    offsets = [int(sum(mof_dims[:i])) for i in range(len(mof_dims))]
    h = jnp.zeros((mof.shape[0], emb_table.shape[1]), jnp.float32)
    for f, off in enumerate(offsets):
        h = h + jnp.take(emb_table, mof[:, f] + off, axis=0).astype(jnp.float32)

    def layer(x, w, b):
        y = jnp.dot(x.astype(w.dtype), w, preferred_element_type=jnp.float32)
        return jnp.maximum(y + b.astype(jnp.float32).reshape(1, -1), 0.0)

    h = layer(h, w1, b1)
    h = layer(h, w2, b2)
    h = layer(h, w3, b3)
    return h


if __name__ == "__main__":
    # Small, module-consistent shapes.
    latent_dim = 32
    mof_dims = [5, 7, 9, 11]           # 4 categorical features
    batch = 8                          # MLP dims: [L, L, L, 2L] (n_layers=3)

    key = jax.random.PRNGKey(0)
    k_emb, k_w1, k_w2, k_w3, k_mof = jax.random.split(key, 5)

    total_vocab = sum(mof_dims)
    # Concatenated embedding table (one block per nn.Embedding), bf16 storage.
    emb_table = (jax.random.normal(k_emb, (total_vocab, latent_dim), jnp.float32)
                 * 0.1).astype(jnp.bfloat16)

    # MLP parameters: Linear weights stored [in, out] (y = x @ W + b), bf16;
    # biases f32.
    w1 = (jax.random.normal(k_w1, (latent_dim, latent_dim), jnp.float32)
          * 0.1).astype(jnp.bfloat16)
    b1 = jnp.zeros((1, latent_dim), jnp.float32)
    w2 = (jax.random.normal(k_w2, (latent_dim, latent_dim), jnp.float32)
          * 0.1).astype(jnp.bfloat16)
    b2 = jnp.full((1, latent_dim), 0.01, jnp.float32)
    w3 = (jax.random.normal(k_w3, (latent_dim, 2 * latent_dim), jnp.float32)
          * 0.1).astype(jnp.bfloat16)
    b3 = jnp.full((1, 2 * latent_dim), 0.02, jnp.float32)
    params = (w1, b1, w2, b2, w3, b3)

    # Integer feature indices, each column bounded by its own vocab size.
    cols = []
    keys = jax.random.split(k_mof, len(mof_dims))
    for kf, n in zip(keys, mof_dims):
        cols.append(jax.random.randint(kf, (batch, 1), 0, n, jnp.int32))
    mof = jnp.concatenate(cols, axis=1)   # [B, n_features] int32

    # One-time parameter prep (padding + E@W1 fusion), then the forward.
    prepared = prepare_mof_encoder_params(emb_table, params, mof_dims)
    out = mof_encoder_forward(mof, prepared)
    out = jax.block_until_ready(out)

    ref = _reference(mof, emb_table, params, mof_dims=mof_dims)
    assert out.shape == (batch, 2 * latent_dim), out.shape
    # bf16 output + EW1 fusion change rounding order slightly vs the reference
    # path; tolerance sized for bf16 (rel eps ~ 4e-3) at these magnitudes.
    assert jnp.allclose(out.astype(jnp.float32), ref, atol=2e-3, rtol=2e-2), \
        "mismatch vs reference"

    print("KERNEL_OK")
</pallas_src>

<mosaic_0001>
module attributes {stable_mosaic.version = 11 : i64} {
  func.func @_mof_encoder_kernel(%arg0: i32, %arg1: memref<8x4xi32, #tpu.memory_space<vmem>>, %arg2: memref<128x128xf32, #tpu.memory_space<vmem>>, %arg3: memref<1x128xf32, #tpu.memory_space<vmem>>, %arg4: memref<128x128xbf16, #tpu.memory_space<vmem>>, %arg5: memref<1x128xf32, #tpu.memory_space<vmem>>, %arg6: memref<128x128xbf16, #tpu.memory_space<vmem>>, %arg7: memref<1x128xf32, #tpu.memory_space<vmem>>, %arg8: memref<8x128xbf16, #tpu.memory_space<vmem>>) attributes {dimension_semantics = [#tpu.dimension_semantics<parallel>], iteration_bounds = array<i64: 1>, scalar_prefetch = 0 : i64, scratch_operands = 0 : i64, tpu.core_type = #tpu.core_type<tc>, window_params = [{transform_indices = @transform_0, window_bounds = array<i64: 8, 4>}, {pipeline_mode = #tpu.pipeline_mode<synchronous>, transform_indices = @transform_1, window_bounds = array<i64: 128, 128>}, {pipeline_mode = #tpu.pipeline_mode<synchronous>, transform_indices = @transform_2, window_bounds = array<i64: 1, 128>}, {pipeline_mode = #tpu.pipeline_mode<synchronous>, transform_indices = @transform_3, window_bounds = array<i64: 128, 128>}, {pipeline_mode = #tpu.pipeline_mode<synchronous>, transform_indices = @transform_4, window_bounds = array<i64: 1, 128>}, {pipeline_mode = #tpu.pipeline_mode<synchronous>, transform_indices = @transform_5, window_bounds = array<i64: 128, 128>}, {pipeline_mode = #tpu.pipeline_mode<synchronous>, transform_indices = @transform_6, window_bounds = array<i64: 1, 128>}, {transform_indices = @transform_7, window_bounds = array<i64: 8, 128>}]} {
    %c0 = arith.constant 0 : index
    %c0_0 = arith.constant 0 : index
    %0 = vector.load %arg1[%c0, %c0_0] : memref<8x4xi32, #tpu.memory_space<vmem>>, vector<8x4xi32>
    %1 = tpu.iota {dimensions = array<i32: 1>} : vector<8x128xi32>
    %2 = vector.extract_strided_slice %0 {offsets = [0, 0], sizes = [8, 1], strides = [1, 1]} : vector<8x4xi32> to vector<8x1xi32>
    %3 = vector.broadcast %2 : vector<8x1xi32> to vector<8x128xi32>
    %4 = arith.cmpi eq, %3, %1 : vector<8x128xi32>
    %5 = arith.extui %4 : vector<8x128xi1> to vector<8x128xi32>
    %6 = arith.sitofp %5 : vector<8x128xi32> to vector<8x128xf32>
    %7 = vector.extract_strided_slice %0 {offsets = [0, 1], sizes = [8, 1], strides = [1, 1]} : vector<8x4xi32> to vector<8x1xi32>
    %8 = vector.broadcast %7 : vector<8x1xi32> to vector<8x128xi32>
    %9 = arith.cmpi eq, %8, %1 : vector<8x128xi32>
    %10 = arith.extui %9 : vector<8x128xi1> to vector<8x128xi32>
    %11 = arith.sitofp %10 : vector<8x128xi32> to vector<8x128xf32>
    %12 = arith.addf %6, %11 : vector<8x128xf32>
    %13 = vector.extract_strided_slice %0 {offsets = [0, 2], sizes = [8, 1], strides = [1, 1]} : vector<8x4xi32> to vector<8x1xi32>
    %14 = vector.broadcast %13 : vector<8x1xi32> to vector<8x128xi32>
    %15 = arith.cmpi eq, %14, %1 : vector<8x128xi32>
    %16 = arith.extui %15 : vector<8x128xi1> to vector<8x128xi32>
    %17 = arith.sitofp %16 : vector<8x128xi32> to vector<8x128xf32>
    %18 = arith.addf %12, %17 : vector<8x128xf32>
    %19 = vector.extract_strided_slice %0 {offsets = [0, 3], sizes = [8, 1], strides = [1, 1]} : vector<8x4xi32> to vector<8x1xi32>
    %20 = vector.broadcast %19 : vector<8x1xi32> to vector<8x128xi32>
    %21 = arith.cmpi eq, %20, %1 : vector<8x128xi32>
    %22 = arith.extui %21 : vector<8x128xi1> to vector<8x128xi32>
    %23 = arith.sitofp %22 : vector<8x128xi32> to vector<8x128xf32>
    %24 = arith.addf %18, %23 : vector<8x128xf32>
    %c0_1 = arith.constant 0 : index
    %c0_2 = arith.constant 0 : index
    %25 = vector.load %arg2[%c0_1, %c0_2] : memref<128x128xf32, #tpu.memory_space<vmem>>, vector<128x128xf32>
    %cst = arith.constant dense<0.000000e+00> : vector<8x128xf32>
    %26 = tpu.matmul %24, %25, %cst {dimension_numbers = #tpu.dot_dimension_numbers<[1], [0], [0], [1], [0, 0, 1, 1], [], []>} : vector<8x128xf32>, vector<128x128xf32>, vector<8x128xf32> -> vector<8x128xf32>
    %c0_3 = arith.constant 0 : index
    %c0_4 = arith.constant 0 : index
    %27 = vector.load %arg3[%c0_3, %c0_4] : memref<1x128xf32, #tpu.memory_space<vmem>>, vector<1x128xf32>
    %28 = vector.broadcast %27 : vector<1x128xf32> to vector<8x128xf32>
    %29 = arith.addf %26, %28 : vector<8x128xf32>
    %cst_5 = arith.constant 0.000000e+00 : f32
    %30 = vector.broadcast %cst_5 : f32 to vector<8x128xf32>
    %31 = arith.maximumf %29, %30 : vector<8x128xf32>
    %32 = arith.truncf %31 : vector<8x128xf32> to vector<8x128xbf16>
    %c0_6 = arith.constant 0 : index
    %c0_7 = arith.constant 0 : index
    %33 = vector.load %arg4[%c0_6, %c0_7] : memref<128x128xbf16, #tpu.memory_space<vmem>>, vector<128x128xbf16>
    %cst_8 = arith.constant dense<0.000000e+00> : vector<8x128xf32>
    %34 = tpu.matmul %32, %33, %cst_8 {dimension_numbers = #tpu.dot_dimension_numbers<[1], [0], [0], [1], [0, 0, 1, 1], [], []>} : vector<8x128xbf16>, vector<128x128xbf16>, vector<8x128xf32> -> vector<8x128xf32>
    %c0_9 = arith.constant 0 : index
    %c0_10 = arith.constant 0 : index
    %35 = vector.load %arg5[%c0_9, %c0_10] : memref<1x128xf32, #tpu.memory_space<vmem>>, vector<1x128xf32>
    %36 = vector.broadcast %35 : vector<1x128xf32> to vector<8x128xf32>
    %37 = arith.addf %34, %36 : vector<8x128xf32>
    %cst_11 = arith.constant 0.000000e+00 : f32
    %38 = vector.broadcast %cst_11 : f32 to vector<8x128xf32>
    %39 = arith.maximumf %37, %38 : vector<8x128xf32>
    %40 = arith.truncf %39 : vector<8x128xf32> to vector<8x128xbf16>
    %c0_12 = arith.constant 0 : index
    %c0_13 = arith.constant 0 : index
    %41 = vector.load %arg6[%c0_12, %c0_13] : memref<128x128xbf16, #tpu.memory_space<vmem>>, vector<128x128xbf16>
    %cst_14 = arith.constant dense<0.000000e+00> : vector<8x128xf32>
    %42 = tpu.matmul %40, %41, %cst_14 {dimension_numbers = #tpu.dot_dimension_numbers<[1], [0], [0], [1], [0, 0, 1, 1], [], []>} : vector<8x128xbf16>, vector<128x128xbf16>, vector<8x128xf32> -> vector<8x128xf32>
    %c0_15 = arith.constant 0 : index
    %c0_16 = arith.constant 0 : index
    %43 = vector.load %arg7[%c0_15, %c0_16] : memref<1x128xf32, #tpu.memory_space<vmem>>, vector<1x128xf32>
    %44 = vector.broadcast %43 : vector<1x128xf32> to vector<8x128xf32>
    %45 = arith.addf %42, %44 : vector<8x128xf32>
    %cst_17 = arith.constant 0.000000e+00 : f32
    %46 = vector.broadcast %cst_17 : f32 to vector<8x128xf32>
    %47 = arith.maximumf %45, %46 : vector<8x128xf32>
    %48 = arith.truncf %47 : vector<8x128xf32> to vector<8x128xbf16>
    %c0_18 = arith.constant 0 : index
    %c0_19 = arith.constant 0 : index
    %49 = vector.load %arg8[%c0_18, %c0_19] : memref<8x128xbf16, #tpu.memory_space<vmem>>, vector<8x128xbf16>
    tpu.vector_store %arg8[%c0_18, %c0_19], %48 {strides = array<i32>} : memref<8x128xbf16, #tpu.memory_space<vmem>>, vector<8x128xbf16>,
    return
  }
  func.func @transform_0(%arg0: i32) -> (i32, i32) {
    %c0_i32 = arith.constant 0 : i32
    %c0_i32_0 = arith.constant 0 : i32
    return %arg0, %c0_i32 : i32, i32
  }
  func.func @transform_1(%arg0: i32) -> (i32, i32) {
    %c0_i32 = arith.constant 0 : i32
    %c0_i32_0 = arith.constant 0 : i32
    %c0_i32_1 = arith.constant 0 : i32
    return %c0_i32, %c0_i32_0 : i32, i32
  }
  func.func @transform_2(%arg0: i32) -> (i32, i32) {
    %c0_i32 = arith.constant 0 : i32
    %c0_i32_0 = arith.constant 0 : i32
    %c0_i32_1 = arith.constant 0 : i32
    return %c0_i32, %c0_i32_0 : i32, i32
  }
  func.func @transform_3(%arg0: i32) -> (i32, i32) {
    %c0_i32 = arith.constant 0 : i32
    %c0_i32_0 = arith.constant 0 : i32
    %c0_i32_1 = arith.constant 0 : i32
    return %c0_i32, %c0_i32_0 : i32, i32
  }
  func.func @transform_4(%arg0: i32) -> (i32, i32) {
    %c0_i32 = arith.constant 0 : i32
    %c0_i32_0 = arith.constant 0 : i32
    %c0_i32_1 = arith.constant 0 : i32
    return %c0_i32, %c0_i32_0 : i32, i32
  }
  func.func @transform_5(%arg0: i32) -> (i32, i32) {
    %c0_i32 = arith.constant 0 : i32
    %c0_i32_0 = arith.constant 0 : i32
    %c0_i32_1 = arith.constant 0 : i32
    return %c0_i32, %c0_i32_0 : i32, i32
  }
  func.func @transform_6(%arg0: i32) -> (i32, i32) {
    %c0_i32 = arith.constant 0 : i32
    %c0_i32_0 = arith.constant 0 : i32
    %c0_i32_1 = arith.constant 0 : i32
    return %c0_i32, %c0_i32_0 : i32, i32
  }
  func.func @transform_7(%arg0: i32) -> (i32, i32) {
    %c0_i32 = arith.constant 0 : i32
    %c0_i32_0 = arith.constant 0 : i32
    return %arg0, %c0_i32 : i32, i32
  }
}

</mosaic_0001>

<llo_original>
// kernel: tpu_custom_call.1
$region0: #{tpu_custom_call.1}
  #allocation0 [shape = 'u32[]', space=smem, size = 0x4, offset = 0x4, fixed_abs, tag = 'smem constant byte address 0x4 - core index']
  #allocation1 [shape = 'u32[72,128]{1,0:T(1,128)}', space=vmem, size = 0x9000, scoped, tag = 'internal scratch']
  %s0 = inlined_call_operand.vmem [shape: s32[8,4], index: 0, kind: input, shape index: {}]
  %s1 = inlined_call_operand.hbm [shape: f32[128,128], index: 1, kind: input, shape index: {}]
  %s2 = inlined_call_operand.vmem [shape: f32[1,128], index: 2, kind: input, shape index: {}]
  %s3 = inlined_call_operand.hbm [shape: bf16[128,128], index: 3, kind: input, shape index: {}]
  %s4 = inlined_call_operand.vmem [shape: f32[1,128], index: 4, kind: input, shape index: {}]
  %s5 = inlined_call_operand.hbm [shape: bf16[128,128], index: 5, kind: input, shape index: {}]
  %s6 = inlined_call_operand.vmem [shape: f32[1,128], index: 6, kind: input, shape index: {}]
  %s7 = inlined_call_operand.hbm [shape: bf16[8,128], index: 7, kind: output, shape index: {}]
  %s8 = sld [smem:[#allocation0]]
  $region50: #{tpu_custom_call.1} parent=0
    _
  %s10 = ssub.s32 1, %s8
  %s11 = scalar_select 0, %s10, %s8
  $region1: #{tpu_custom_call.1} parent=0
    #allocation2 [shape = 'u8[65536]{0}', space=vmem, size = 0x10000, scoped, tag = 'input window, operand 1, single buffered']
    #allocation3 [shape = 's32[1]{0}', space=sflag, size = 0x4, scoped, tag = 'scoped memory for tpu_custom_call.1']
    #allocation4 [shape = 's32[1]{0}', space=sflag, size = 0x4, scoped, tag = 'scoped memory for tpu_custom_call.1']
    #allocation5 [shape = 'u8[32768]{0}', space=vmem, size = 0x8000, scoped, tag = 'input window, operand 3, single buffered']
    #allocation6 [shape = 's32[1]{0}', space=sflag, size = 0x4, scoped, tag = 'scoped memory for tpu_custom_call.1']
    #allocation7 [shape = 'u8[32768]{0}', space=vmem, size = 0x8000, scoped, tag = 'input window, operand 5, single buffered']
    #allocation8 [shape = 'u8[2048]{0}', space=vmem, size = 0x800, scoped, tag = 'output window, operand 0, single buffered']
    %12 = vsyncpa [#allocation3], 0
    %13 = vsyncpa [#allocation6], 0
    %14 = vsyncpa [#allocation4], 0
    // Predicated region
    $region2: #{tpu_custom_call.1} parent=1 // pred_check
      _
    $region3: #{tpu_custom_call.1} parent=1 // pred_check_branch
      %16 = sbr.rel (0) target = $region5
    $region4: #{tpu_custom_call.1} parent=1 // pred_region
      _
    $region5: #{tpu_custom_call.1} parent=1 // pred_fallthru
      _
    // Predicated region
    $region6: #{tpu_custom_call.1} parent=1 // pred_check
      _
    $region7: #{tpu_custom_call.1} parent=1 // pred_check_branch
      %18 = sbr.rel (0) target = $region9
    $region8: #{tpu_custom_call.1} parent=1 // pred_region
      %20 = vsyncadd [#allocation3], 0
      %s21 = sshll.u32 %s1, 4
      %s22 = int_to_ptr.hbm [resolvable:$true] %s21
      %s23 = sshll.u32 [#allocation2], 4
      %s24 = int_to_ptr.vmem [resolvable:$true] %s23
      %29 = dma.hbm_to_vmem [thread:$0]  %s22, 2048, %s24, [#allocation3], 128, 128, 8
    $region9: #{tpu_custom_call.1} parent=1 // pred_fallthru
      _
    // Predicated region
    $region10: #{tpu_custom_call.1} parent=1 // pred_check
      _
    $region11: #{tpu_custom_call.1} parent=1 // pred_check_branch
      %31 = sbr.rel (0) target = $region13
    $region12: #{tpu_custom_call.1} parent=1 // pred_region
      _
    $region13: #{tpu_custom_call.1} parent=1 // pred_fallthru
      _
    // Predicated region
    $region14: #{tpu_custom_call.1} parent=1 // pred_check
      _
    $region15: #{tpu_custom_call.1} parent=1 // pred_check_branch
      %33 = sbr.rel (0) target = $region17
    $region16: #{tpu_custom_call.1} parent=1 // pred_region
      %35 = vsyncadd [#allocation6], 0
      %s36 = sshll.u32 %s3, 4
      %s37 = int_to_ptr.hbm [resolvable:$true] %s36
      %s38 = sshll.u32 [#allocation5], 4
      %s39 = int_to_ptr.vmem [resolvable:$true] %s38
      %44 = dma.hbm_to_vmem [thread:$0]  %s37, 1024, %s39, [#allocation6], 64, 64, 4
    $region17: #{tpu_custom_call.1} parent=1 // pred_fallthru
      _
    // Predicated region
    $region18: #{tpu_custom_call.1} parent=1 // pred_check
      _
    $region19: #{tpu_custom_call.1} parent=1 // pred_check_branch
      %46 = sbr.rel (0) target = $region21
    $region20: #{tpu_custom_call.1} parent=1 // pred_region
      _
    $region21: #{tpu_custom_call.1} parent=1 // pred_fallthru
      _
    // Predicated region
    $region22: #{tpu_custom_call.1} parent=1 // pred_check
      _
    $region23: #{tpu_custom_call.1} parent=1 // pred_check_branch
      %48 = sbr.rel (0) target = $region25
    $region24: #{tpu_custom_call.1} parent=1 // pred_region
      %50 = vsyncadd [#allocation6], 0
      %s51 = sshll.u32 %s5, 4
      %s52 = int_to_ptr.hbm [resolvable:$true] %s51
      %s53 = sshll.u32 [#allocation7], 4
      %s54 = int_to_ptr.vmem [resolvable:$true] %s53
      %59 = dma.hbm_to_vmem [thread:$0]  %s52, 1024, %s54, [#allocation6], 64, 64, 4
    $region25: #{tpu_custom_call.1} parent=1 // pred_fallthru
      _
    // Predicated region
    $region26: #{tpu_custom_call.1} parent=1 // pred_check
      _
    $region27: #{tpu_custom_call.1} parent=1 // pred_check_branch
      %61 = sbr.rel (0) target = $region29
    $region28: #{tpu_custom_call.1} parent=1 // pred_region
      _
    $region29: #{tpu_custom_call.1} parent=1 // pred_fallthru
      _
    // Predicated region
    $region30: #{tpu_custom_call.1} parent=1 // pred_check
      _
    $region31: #{tpu_custom_call.1} parent=1 // pred_check_branch
      %63 = sbr.rel (0) target = $region33
    $region32: #{tpu_custom_call.1} parent=1 // pred_region
      %65 = dma.done [#allocation3], 2048
    $region33: #{tpu_custom_call.1} parent=1 // pred_fallthru
      _
    // Predicated region
    $region34: #{tpu_custom_call.1} parent=1 // pred_check
      _
    $region35: #{tpu_custom_call.1} parent=1 // pred_check_branch
      %67 = sbr.rel (0) target = $region37
    $region36: #{tpu_custom_call.1} parent=1 // pred_region
      %69 = dma.done [#allocation6], 1024
    $region37: #{tpu_custom_call.1} parent=1 // pred_fallthru
      _
    // Predicated region
    $region38: #{tpu_custom_call.1} parent=1 // pred_check
      _
    $region39: #{tpu_custom_call.1} parent=1 // pred_check_branch
      %71 = sbr.rel (0) target = $region41
    $region40: #{tpu_custom_call.1} parent=1 // pred_region
      %73 = dma.done [#allocation6], 1024
    $region41: #{tpu_custom_call.1} parent=1 // pred_fallthru
      _
    %v74 = vld [vmem:[%s0] sm:$0xff]
    %v75 = vlaneseq
    %v76 = vand.u32 %v75, 127
    %77 = vset.pattern.permute.xlu0 0
    %78 = vperm.xlu0 %77, %v74
    %v79 = vpop.permute.xlu0 %78
    %vm80 = vcmp.eq.s32.totalorder %v79, %v76
    %v81 = vsel %vm80, 1, 0
    %v82 = vcvt.s32.f32 %v81
    %83 = vset.pattern.permute.xlu0 1
    %84 = vperm.xlu0 %83, %v74
    %v85 = vpop.permute.xlu0 %84
    %vm86 = vcmp.eq.s32.totalorder %v85, %v76
    %v87 = vsel %vm86, 1, 0
    %v88 = vcvt.s32.f32 %v87
    %v89 = vadd.f32 %v82, %v88
    %90 = vset.pattern.permute.xlu0 2
    %91 = vperm.xlu0 %90, %v74
    %v92 = vpop.permute.xlu0 %91
    %vm93 = vcmp.eq.s32.totalorder %v92, %v76
    %v94 = vsel %vm93, 1, 0
    %v95 = vcvt.s32.f32 %v94
    %v96 = vadd.f32 %v89, %v95
    %97 = vset.pattern.permute.xlu0 3
    %98 = vperm.xlu0 %97, %v74
    %v99 = vpop.permute.xlu0 %98
    %vm100 = vcmp.eq.s32.totalorder %v99, %v76
    %v101 = vsel %vm100, 1, 0
    %v102 = vcvt.s32.f32 %v101
    %v103 = vadd.f32 %v96, %v102
    %v104 = vld [vmem:[#allocation2] sm:$0xff]
    %v105 = vld [vmem:[#allocation2 + $0x8] sm:$0xff]
    %v106 = vld [vmem:[#allocation2 + $0x10] sm:$0xff]
    %v107 = vld [vmem:[#allocation2 + $0x18] sm:$0xff]
    %v108 = vld [vmem:[#allocation2 + $0x20] sm:$0xff]
    %v109 = vld [vmem:[#allocation2 + $0x28] sm:$0xff]
    %v110 = vld [vmem:[#allocation2 + $0x30] sm:$0xff]
    %v111 = vld [vmem:[#allocation2 + $0x38] sm:$0xff]
    %v112 = vld [vmem:[#allocation2 + $0x40] sm:$0xff]
    %v113 = vld [vmem:[#allocation2 + $0x48] sm:$0xff]
    %v114 = vld [vmem:[#allocation2 + $0x50] sm:$0xff]
    %v115 = vld [vmem:[#allocation2 + $0x58] sm:$0xff]
    %v116 = vld [vmem:[#allocation2 + $0x60] sm:$0xff]
    %v117 = vld [vmem:[#allocation2 + $0x68] sm:$0xff]
    %v118 = vld [vmem:[#allocation2 + $0x70] sm:$0xff]
    %v119 = vld [vmem:[#allocation2 + $0x78] sm:$0xff]
    %v120 = vld [vmem:[%s2] sm:$0x1]
    %v122 = vperm.slane %v120, 0
    %124 = vmatpush.msra.mxu0 %v119
    %125 = vmatpush.msra.mxu0 %v118
    %126 = vmatpush.msra.mxu0 %v117
    %127 = vmatpush.msra.mxu0 %v116
    %128 = vmatpush.msra.mxu0 %v115
    %129 = vmatpush.msra.mxu0 %v114
    %130 = vmatpush.msra.mxu0 %v113
    %131 = vmatpush.msra.mxu0 %v112
    %132 = vmatpush.msra.mxu0 %v111
    %133 = vmatpush.msra.mxu0 %v110
    %134 = vmatpush.msra.mxu0 %v109
    %135 = vmatpush.msra.mxu0 %v108
    %136 = vmatpush.msra.mxu0 %v107
    %137 = vmatpush.msra.mxu0 %v106
    %138 = vmatpush.msra.mxu0 %v105
    %139 = vmatpush.msra.mxu0 %v104
    %140 = vmatmul.f32.gmra.mxu0 %v103
    %v141 = vpop.f32.mrf.mxu0
    %v142 = vadd.f32 %v122, %v141
    %143 = vdwg.mxu0
    %v144 = vmax.f32 %v142, 0.0
    %v145 = vpack.c.bf16 %v144, %v144
    %v146 = vld [vmem:[#allocation5] sm:$0xf]
    %v147 = vld [vmem:[#allocation5 + $0x4] sm:$0xf]
    %v148 = vld [vmem:[#allocation5 + $0x8] sm:$0xf]
    %v149 = vld [vmem:[#allocation5 + $0xc] sm:$0xf]
    %v150 = vld [vmem:[#allocation5 + $0x10] sm:$0xf]
    %v151 = vld [vmem:[#allocation5 + $0x14] sm:$0xf]
    %v152 = vld [vmem:[#allocation5 + $0x18] sm:$0xf]
    %v153 = vld [vmem:[#allocation5 + $0x1c] sm:$0xf]
    %v154 = vld [vmem:[#allocation5 + $0x20] sm:$0xf]
    %v155 = vld [vmem:[#allocation5 + $0x24] sm:$0xf]
    %v156 = vld [vmem:[#allocation5 + $0x28] sm:$0xf]
    %v157 = vld [vmem:[#allocation5 + $0x2c] sm:$0xf]
    %v158 = vld [vmem:[#allocation5 + $0x30] sm:$0xf]
    %v159 = vld [vmem:[#allocation5 + $0x34] sm:$0xf]
    %v160 = vld [vmem:[#allocation5 + $0x38] sm:$0xf]
    %v161 = vld [vmem:[#allocation5 + $0x3c] sm:$0xf]
    %v162 = vld [vmem:[%s4] sm:$0x1]
    %v164 = vperm.slane %v162, 0
    %v182 = vunpack.c.l.b16 %v146
    %v183 = vunpack.c.l.b16 %v147
    %v184 = vunpack.c.l.b16 %v148
    %v185 = vunpack.c.l.b16 %v149
    %v186 = vunpack.c.l.b16 %v150
    %v187 = vunpack.c.l.b16 %v151
    %v188 = vunpack.c.l.b16 %v152
    %v189 = vunpack.c.l.b16 %v153
    %v190 = vunpack.c.l.b16 %v154
    %v191 = vunpack.c.l.b16 %v155
    %v192 = vunpack.c.l.b16 %v156
    %v193 = vunpack.c.l.b16 %v157
    %v194 = vunpack.c.l.b16 %v158
    %v195 = vunpack.c.l.b16 %v159
    %v196 = vunpack.c.l.b16 %v160
    %v197 = vunpack.c.l.b16 %v161
    %v198 = vpack.c.b16 %v183, %v182
    %v199 = vpack.c.b16 %v185, %v184
    %v200 = vpack.c.b16 %v187, %v186
    %v201 = vpack.c.b16 %v189, %v188
    %v202 = vpack.c.b16 %v191, %v190
    %v203 = vpack.c.b16 %v193, %v192
    %v204 = vpack.c.b16 %v195, %v194
    %v205 = vpack.c.b16 %v197, %v196
    %214 = vmatpush.bf16.msra.mxu0 %v205
    %215 = vmatpush.bf16.msra.mxu0 %v204
    %216 = vmatpush.bf16.msra.mxu0 %v203
    %217 = vmatpush.bf16.msra.mxu0 %v202
    %218 = vmatpush.bf16.msra.mxu0 %v201
    %219 = vmatpush.bf16.msra.mxu0 %v200
    %220 = vmatpush.bf16.msra.mxu0 %v199
    %221 = vmatpush.bf16.msra.mxu0 %v198
    %222 = vmatmul.bf16.gmra.mxu0 %v145
    %v223 = vpop.f32.mrf.mxu0
    %v224 = vadd.f32 %v164, %v223
    %v225 = vpop.f32.mrf.mxu0
    %226 = vdwg.mxu0
    %v227 = vmax.f32 %v224, 0.0
    %v228 = vpack.c.bf16 %v227, %v227
    %v229 = vld [vmem:[#allocation7] sm:$0xf]
    %v230 = vld [vmem:[#allocation7 + $0x4] sm:$0xf]
    %v231 = vld [vmem:[#allocation7 + $0x8] sm:$0xf]
    %v232 = vld [vmem:[#allocation7 + $0xc] sm:$0xf]
    %v233 = vld [vmem:[#allocation7 + $0x10] sm:$0xf]
    %v234 = vld [vmem:[#allocation7 + $0x14] sm:$0xf]
    %v235 = vld [vmem:[#allocation7 + $0x18] sm:$0xf]
    %v236 = vld [vmem:[#allocation7 + $0x1c] sm:$0xf]
    %v237 = vld [vmem:[#allocation7 + $0x20] sm:$0xf]
    %v238 = vld [vmem:[#allocation7 + $0x24] sm:$0xf]
    %v239 = vld [vmem:[#allocation7 + $0x28] sm:$0xf]
    %v240 = vld [vmem:[#allocation7 + $0x2c] sm:$0xf]
    %v241 = vld [vmem:[#allocation7 + $0x30] sm:$0xf]
    %v242 = vld [vmem:[#allocation7 + $0x34] sm:$0xf]
    %v243 = vld [vmem:[#allocation7 + $0x38] sm:$0xf]
    %v244 = vld [vmem:[#allocation7 + $0x3c] sm:$0xf]
    %v245 = vld [vmem:[%s6] sm:$0x1]
    %v247 = vperm.slane %v245, 0
    %v265 = vunpack.c.l.b16 %v229
    %v266 = vunpack.c.l.b16 %v230
    %v267 = vunpack.c.l.b16 %v231
    %v268 = vunpack.c.l.b16 %v232
    %v269 = vunpack.c.l.b16 %v233
    %v270 = vunpack.c.l.b16 %v234
    %v271 = vunpack.c.l.b16 %v235
    %v272 = vunpack.c.l.b16 %v236
    %v273 = vunpack.c.l.b16 %v237
    %v274 = vunpack.c.l.b16 %v238
    %v275 = vunpack.c.l.b16 %v239
    %v276 = vunpack.c.l.b16 %v240
    %v277 = vunpack.c.l.b16 %v241
    %v278 = vunpack.c.l.b16 %v242
    %v279 = vunpack.c.l.b16 %v243
    %v280 = vunpack.c.l.b16 %v244
    %v281 = vpack.c.b16 %v266, %v265
    %v282 = vpack.c.b16 %v268, %v267
    %v283 = vpack.c.b16 %v270, %v269
    %v284 = vpack.c.b16 %v272, %v271
    %v285 = vpack.c.b16 %v274, %v273
    %v286 = vpack.c.b16 %v276, %v275
    %v287 = vpack.c.b16 %v278, %v277
    %v288 = vpack.c.b16 %v280, %v279
    %297 = vmatpush.bf16.msra.mxu0 %v288
    %298 = vmatpush.bf16.msra.mxu0 %v287
    %299 = vmatpush.bf16.msra.mxu0 %v286
    %300 = vmatpush.bf16.msra.mxu0 %v285
    %301 = vmatpush.bf16.msra.mxu0 %v284
    %302 = vmatpush.bf16.msra.mxu0 %v283
    %303 = vmatpush.bf16.msra.mxu0 %v282
    %304 = vmatpush.bf16.msra.mxu0 %v281
    %305 = vmatmul.bf16.gmra.mxu0 %v228
    %v306 = vpop.f32.mrf.mxu0
    %v307 = vadd.f32 %v247, %v306
    %v308 = vpop.f32.mrf.mxu0
    %309 = vdwg.mxu0
    %v310 = vmax.f32 %v307, 0.0
    %v311 = vpack.c.bf16 %v310, %v310
    %312 = vst [vmem:[#allocation8] sm:$0xf] %v311
    // Predicated region
    $region42: #{tpu_custom_call.1} parent=1 // pred_check
      _
    $region43: #{tpu_custom_call.1} parent=1 // pred_check_branch
      %314 = sbr.rel (0) target = $region45
    $region44: #{tpu_custom_call.1} parent=1 // pred_region
      %316 = vsyncadd [#allocation4], 0
      %s318 = sshll.u32 [#allocation8], 4
      %s319 = int_to_ptr.vmem [resolvable:$true] %s318
      %s320 = sshll.u32 %s7, 4
      %s321 = int_to_ptr.hbm [resolvable:$true] %s320
      %323 = dma.vmem_to_hbm [thread:$0]  %s319, 64, %s321, [#allocation4]
    $region45: #{tpu_custom_call.1} parent=1 // pred_fallthru
      _
    // Predicated region
    $region46: #{tpu_custom_call.1} parent=1 // pred_check
      _
    $region47: #{tpu_custom_call.1} parent=1 // pred_check_branch
      %325 = sbr.rel (0) target = $region49
    $region48: #{tpu_custom_call.1} parent=1 // pred_region
      %327 = dma.done [#allocation4], 64
    $region49: #{tpu_custom_call.1} parent=1 // pred_fallthru
      _
    %328 = vsyncpa [#allocation3], 1
    %329 = vsyncpa [#allocation6], 1
    %330 = vsyncpa [#allocation4], 1

</llo_original>
